<compile_context>
chip_gen: v7x
topology: tpu7x:2x2x1
jax: 0.10.0
libtpu: 0.0.40
codegen_flags: <defaults>
</compile_context>

<pallas_src>
import jax
import jax.numpy as jnp
from jax.experimental import pallas as pl
from jax.experimental.pallas import tpu as pltpu


# ----------------------------------------------------------------------------
# Pallas kernel: fused im2col (shifted slices of the flattened image) + conv
# taps on the MXU (f32 accumulate) + BN shift + ReLU.  Cout on sublanes, the
# flattened spatial axis on lanes (dense, 128-multiple stores).
# ----------------------------------------------------------------------------
def _make_conv_bn_relu_kernel(KH, KW, Wp, Lo_pad):
    def kernel(x_ref, w_ref, shift_ref, o_ref):
        # x_ref:     (Cin, Lx_pad)       bf16  row-flattened, padded image
        # w_ref:     (KH*KW, Cout, Cin)  bf16  BN-scale-folded conv weight
        # shift_ref: (Cout, 1)           f32   beta - running_mean * scale
        # o_ref:     (Cout, Lo_pad)      out dtype, flattened (Ho*Wp) + lane pad
        x = x_ref[...]                                        # read image once
        acc = None
        for kh in range(KH):
            for kw in range(KW):
                t = kh * KW + kw
                s = kh * Wp + kw                              # static tap offset
                xs = x[:, s:s + Lo_pad]                       # (Cin, Lo_pad)
                part = jnp.dot(w_ref[t], xs,                  # (Cout, Lo_pad) f32
                               preferred_element_type=jnp.float32)
                acc = part if acc is None else acc + part
        y = acc + shift_ref[...]                              # BatchNorm (eval)
        o_ref[...] = jnp.maximum(y, 0.0).astype(o_ref.dtype)  # ReLU

    return kernel


def conv_bn_relu_pallas(x_padded_nchw, w_oihw, scale, shift,
                        out_dtype=jnp.bfloat16):
    """conv(KHxKW, stride 1, VALID) + BN(eval) + ReLU, im2col fused in-kernel.

    x_padded_nchw : (N, Cin, Hp, Wp) already padded input (NCHW)
    w_oihw        : (Cout, Cin, KH, KW) PyTorch-layout conv weight
    scale, shift  : (Cout,) folded BatchNorm parameters
    returns       : (N, Cout, Ho, Wo) in NCHW (out_dtype, default bf16)
    """
    N, Cin, Hp, Wp = x_padded_nchw.shape
    Cout, Cin_w, KH, KW = w_oihw.shape
    assert Cin_w == Cin
    Ho, Wo = Hp - KH + 1, Wp - KW + 1
    assert Ho > 0 and Wo > 0

    # Flattened-output length: conv evaluated at all Wp column positions per
    # output row; the last (KW-1) columns of each row are junk (wrap into the
    # next row) and are sliced off by the wrapper below.
    Lo = Ho * Wp
    Lo_pad = pl.cdiv(Lo, 128) * 128                    # dense lane stores
    max_tap = (KH - 1) * Wp + (KW - 1)
    Lx_pad = pl.cdiv(max_tap + Lo_pad, 128) * 128      # dense lane loads

    # bf16 operands: halves HBM traffic (f32 accumulation inside the kernel).
    x_flat = x_padded_nchw.astype(jnp.bfloat16).reshape(N, Cin, Hp * Wp)
    x_flat = jnp.pad(x_flat, ((0, 0), (0, 0), (0, Lx_pad - Hp * Wp)))

    # Fold BN scale into the conv weight; tap-major layout (KH*KW, Cout, Cin).
    w_f = w_oihw.astype(jnp.float32) * scale.astype(jnp.float32)[:, None, None, None]
    w_taps = jnp.transpose(w_f, (2, 3, 0, 1)).reshape(KH * KW, Cout, Cin)
    w_taps = w_taps.astype(jnp.bfloat16)
    shift2 = shift.reshape(Cout, 1).astype(jnp.float32)

    kernel = _make_conv_bn_relu_kernel(KH, KW, Wp, Lo_pad)

    out_flat = pl.pallas_call(
        kernel,
        out_shape=jax.ShapeDtypeStruct((N, Cout, Lo_pad), out_dtype),
        grid_spec=pltpu.PrefetchScalarGridSpec(
            num_scalar_prefetch=0,
            grid=(N,),                                   # one image per step
            in_specs=[
                pl.BlockSpec((None, Cin, Lx_pad), lambda n: (n, 0, 0)),   # image
                pl.BlockSpec((KH * KW, Cout, Cin), lambda n: (0, 0, 0)),  # weight (resident)
                pl.BlockSpec((Cout, 1), lambda n: (0, 0)),                # shift (resident)
            ],
            out_specs=pl.BlockSpec((None, Cout, Lo_pad), lambda n: (n, 0, 0)),
        ),
        compiler_params=pltpu.CompilerParams(
            dimension_semantics=("parallel",),           # shards over v7x's 2 TCs
            vmem_limit_bytes=32 * 1024 * 1024,
        ),
    )(x_flat, w_taps, shift2)

    # Strip lane padding and the (KW-1) junk columns per output row.
    # NOTE: this slice is load-bearing (junk columns hold wrapped garbage) —
    # do not remove it when changing the output layout.
    out = out_flat[:, :, :Lo].reshape(N, Cout, Ho, Wp)[:, :, :, :Wo]
    return out


# ----------------------------------------------------------------------------
# ConvBDCP forward (feature_only mode): padding glue in plain JAX + kernel.
# ----------------------------------------------------------------------------
def _bdcp_azimuth_pad(x, nsectors, pad):
    """Bidirectional cross-sector azimuth (H-axis) padding, as in ConvBDCP."""
    if nsectors == 1:
        return jnp.pad(x, ((0, 0), (0, 0), (pad, pad), (0, 0)), mode='wrap')
    N, C, H, W = x.shape
    assert N % nsectors == 0, "batch must be divisible by nsectors"
    x5 = x.reshape(nsectors, N // nsectors, C, H, W)
    # borrow bottom rows of previous sector as top context of next sector
    tmp = jnp.concatenate([x5[:-1, :, :, -pad:, :], x5[1:]], axis=-2)
    last = jnp.pad(x5[-1:], ((0, 0), (0, 0), (0, 0), (0, pad), (0, 0)))
    x5 = jnp.concatenate([tmp, last], axis=0)
    # borrow top rows of next sector as bottom context of previous sector
    tmp = jnp.concatenate([x5[:-1], x5[1:, :, :, :pad, :]], axis=-2)
    first = jnp.pad(x5[:1], ((0, 0), (0, 0), (0, 0), (pad, 0), (0, 0)))
    x5 = jnp.concatenate([first, tmp], axis=0)
    return x5.reshape(-1, C, H + 2 * pad, W)


def conv_bdcp_forward(state, params, padding=1, out_dtype=jnp.bfloat16):
    x = state['input']                       # NCHW
    state['cur_context'].append(x)
    # TODO(synk): streaming mode (prev_sweep / sec_id) not implemented.
    assert state['mode'] == 'feature_only'

    # Cast early: the padding glue and the kernel input DMA move half the
    # bytes (deliberate bf16 precision choice for this activation path).
    x16 = x.astype(jnp.bfloat16)
    xp = _bdcp_azimuth_pad(x16, state['nsectors'], padding)
    xp = jnp.pad(xp, ((0, 0), (0, 0), (0, 0), (padding, padding)))  # W zero pad

    # self.block = Conv2d + BN + ReLU  -> Pallas kernel
    w, scale, shift = params
    state['input'] = conv_bn_relu_pallas(xp, w, scale, shift, out_dtype=out_dtype)
    return state


# ----------------------------------------------------------------------------
# Pure-JAX f32 reference for the conv+BN+ReLU part (correctness check).
# ----------------------------------------------------------------------------
def ref_conv_bn_relu(x_padded_nchw, w_oihw, scale, shift):
    x = jnp.transpose(x_padded_nchw, (0, 2, 3, 1)).astype(jnp.float32)
    w = jnp.transpose(w_oihw, (2, 3, 1, 0)).astype(jnp.float32)
    y = jax.lax.conv_general_dilated(
        x, w, window_strides=(1, 1), padding='VALID',
        dimension_numbers=('NHWC', 'HWIO', 'NHWC'))
    y = y * scale.reshape(1, 1, 1, -1) + shift.reshape(1, 1, 1, -1)
    y = jnp.maximum(y, 0.0)
    return jnp.transpose(y, (0, 3, 1, 2))


if __name__ == "__main__":
    key = jax.random.PRNGKey(0)
    k_x, k_w, k_g, k_b = jax.random.split(key, 4)

    # Module config: inplanes=4, outplanes=8, kernel=3, stride=1, padding=1,
    # bias=False, norm = BatchNorm2d, nsectors in {1, 2}.
    inplanes, outplanes, K, padding = 4, 8, 3, 1
    batch, H, W = 2, 16, 16

    x = jax.random.normal(k_x, (batch, inplanes, H, W), dtype=jnp.float32)

    # Deterministic synthetic parameters (no checkpoint load).
    w = 0.1 * jax.random.normal(k_w, (outplanes, inplanes, K, K), dtype=jnp.float32)
    gamma = 1.0 + 0.1 * jax.random.normal(k_g, (outplanes,), dtype=jnp.float32)
    beta = 0.1 * jax.random.normal(k_b, (outplanes,), dtype=jnp.float32)
    run_mean = jnp.zeros((outplanes,), jnp.float32)
    run_var = jnp.ones((outplanes,), jnp.float32)
    eps = 1e-3
    scale = gamma / jnp.sqrt(run_var + eps)
    shift = beta - run_mean * scale
    params = (w, scale, shift)

    ok = True
    for nsectors in (1, 2):
        state = {
            'input': x,
            'mode': 'feature_only',
            'nsectors': nsectors,
            'cur_context': [],
            'prev_context': [],
        }
        out_state = conv_bdcp_forward(dict(state), params, padding=padding)
        y = jax.block_until_ready(out_state['input'])

        # Rebuild the padded input in f32 with the same glue and run the
        # pure-JAX reference conv+BN+ReLU.
        xp_ref = _bdcp_azimuth_pad(x, nsectors, padding)
        xp_ref = jnp.pad(xp_ref, ((0, 0), (0, 0), (0, 0), (padding, padding)))
        y_ref = ref_conv_bn_relu(xp_ref, w, scale, shift)

        # bf16 operands + bf16 output -> loosened tolerance vs f32 reference
        # (deliberate precision choice for this activation path).
        ok &= bool(jnp.allclose(y.astype(jnp.float32), y_ref, atol=3e-2, rtol=3e-2))
        assert y.shape == (batch, outplanes, H, W), y.shape

    if ok:
        print("KERNEL_OK")
    else:
        print("MISMATCH")
</pallas_src>

<mosaic_0001>
module attributes {stable_mosaic.version = 11 : i64} {
  func.func @kernel(%arg0: i32, %arg1: memref<1x4x512xbf16, #tpu.memory_space<vmem>>, %arg2: memref<9x8x4xbf16, #tpu.memory_space<vmem>>, %arg3: memref<8x1xf32, #tpu.memory_space<vmem>>, %arg4: memref<1x8x384xbf16, #tpu.memory_space<vmem>>) attributes {dimension_semantics = [#tpu.dimension_semantics<parallel>], iteration_bounds = array<i64: 2>, scalar_prefetch = 0 : i64, scratch_operands = 0 : i64, tpu.core_type = #tpu.core_type<tc>, window_params = [{transform_indices = @transform_0, window_bounds = array<i64: 1, 4, 512>}, {pipeline_mode = #tpu.pipeline_mode<synchronous>, transform_indices = @transform_1, window_bounds = array<i64: 9, 8, 4>}, {pipeline_mode = #tpu.pipeline_mode<synchronous>, transform_indices = @transform_2, window_bounds = array<i64: 8, 1>}, {transform_indices = @transform_3, window_bounds = array<i64: 1, 8, 384>}]} {
    %c0 = arith.constant 0 : index
    %c0_0 = arith.constant 0 : index
    %c0_1 = arith.constant 0 : index
    %0 = vector.load %arg1[%c0, %c0_0, %c0_1] : memref<1x4x512xbf16, #tpu.memory_space<vmem>>, vector<1x4x512xbf16>
    %1 = vector.shape_cast %0 : vector<1x4x512xbf16> to vector<4x512xbf16>
    %2 = vector.extract_strided_slice %1 {offsets = [0, 0], sizes = [4, 384], strides = [1, 1]} : vector<4x512xbf16> to vector<4x384xbf16>
    %c0_2 = arith.constant 0 : index
    %c0_3 = arith.constant 0 : index
    %c0_4 = arith.constant 0 : index
    %3 = vector.load %arg2[%c0_2, %c0_3, %c0_4] : memref<9x8x4xbf16, #tpu.memory_space<vmem>>, vector<1x8x4xbf16>
    %4 = vector.shape_cast %3 : vector<1x8x4xbf16> to vector<8x4xbf16>
    %cst = arith.constant dense<0.000000e+00> : vector<8x384xf32>
    %5 = tpu.matmul %4, %2, %cst {dimension_numbers = #tpu.dot_dimension_numbers<[1], [0], [0], [1], [0, 0, 1, 1], [], []>} : vector<8x4xbf16>, vector<4x384xbf16>, vector<8x384xf32> -> vector<8x384xf32>
    %6 = vector.extract_strided_slice %1 {offsets = [0, 1], sizes = [4, 384], strides = [1, 1]} : vector<4x512xbf16> to vector<4x384xbf16>
    %c1 = arith.constant 1 : index
    %c0_5 = arith.constant 0 : index
    %c0_6 = arith.constant 0 : index
    %7 = vector.load %arg2[%c1, %c0_5, %c0_6] : memref<9x8x4xbf16, #tpu.memory_space<vmem>>, vector<1x8x4xbf16>
    %8 = vector.shape_cast %7 : vector<1x8x4xbf16> to vector<8x4xbf16>
    %cst_7 = arith.constant dense<0.000000e+00> : vector<8x384xf32>
    %9 = tpu.matmul %8, %6, %cst_7 {dimension_numbers = #tpu.dot_dimension_numbers<[1], [0], [0], [1], [0, 0, 1, 1], [], []>} : vector<8x4xbf16>, vector<4x384xbf16>, vector<8x384xf32> -> vector<8x384xf32>
    %10 = arith.addf %5, %9 : vector<8x384xf32>
    %11 = vector.extract_strided_slice %1 {offsets = [0, 2], sizes = [4, 384], strides = [1, 1]} : vector<4x512xbf16> to vector<4x384xbf16>
    %c2 = arith.constant 2 : index
    %c0_8 = arith.constant 0 : index
    %c0_9 = arith.constant 0 : index
    %12 = vector.load %arg2[%c2, %c0_8, %c0_9] : memref<9x8x4xbf16, #tpu.memory_space<vmem>>, vector<1x8x4xbf16>
    %13 = vector.shape_cast %12 : vector<1x8x4xbf16> to vector<8x4xbf16>
    %cst_10 = arith.constant dense<0.000000e+00> : vector<8x384xf32>
    %14 = tpu.matmul %13, %11, %cst_10 {dimension_numbers = #tpu.dot_dimension_numbers<[1], [0], [0], [1], [0, 0, 1, 1], [], []>} : vector<8x4xbf16>, vector<4x384xbf16>, vector<8x384xf32> -> vector<8x384xf32>
    %15 = arith.addf %10, %14 : vector<8x384xf32>
    %16 = vector.extract_strided_slice %1 {offsets = [0, 18], sizes = [4, 384], strides = [1, 1]} : vector<4x512xbf16> to vector<4x384xbf16>
    %c3 = arith.constant 3 : index
    %c0_11 = arith.constant 0 : index
    %c0_12 = arith.constant 0 : index
    %17 = vector.load %arg2[%c3, %c0_11, %c0_12] : memref<9x8x4xbf16, #tpu.memory_space<vmem>>, vector<1x8x4xbf16>
    %18 = vector.shape_cast %17 : vector<1x8x4xbf16> to vector<8x4xbf16>
    %cst_13 = arith.constant dense<0.000000e+00> : vector<8x384xf32>
    %19 = tpu.matmul %18, %16, %cst_13 {dimension_numbers = #tpu.dot_dimension_numbers<[1], [0], [0], [1], [0, 0, 1, 1], [], []>} : vector<8x4xbf16>, vector<4x384xbf16>, vector<8x384xf32> -> vector<8x384xf32>
    %20 = arith.addf %15, %19 : vector<8x384xf32>
    %21 = vector.extract_strided_slice %1 {offsets = [0, 19], sizes = [4, 384], strides = [1, 1]} : vector<4x512xbf16> to vector<4x384xbf16>
    %c4 = arith.constant 4 : index
    %c0_14 = arith.constant 0 : index
    %c0_15 = arith.constant 0 : index
    %22 = vector.load %arg2[%c4, %c0_14, %c0_15] : memref<9x8x4xbf16, #tpu.memory_space<vmem>>, vector<1x8x4xbf16>
    %23 = vector.shape_cast %22 : vector<1x8x4xbf16> to vector<8x4xbf16>
    %cst_16 = arith.constant dense<0.000000e+00> : vector<8x384xf32>
    %24 = tpu.matmul %23, %21, %cst_16 {dimension_numbers = #tpu.dot_dimension_numbers<[1], [0], [0], [1], [0, 0, 1, 1], [], []>} : vector<8x4xbf16>, vector<4x384xbf16>, vector<8x384xf32> -> vector<8x384xf32>
    %25 = arith.addf %20, %24 : vector<8x384xf32>
    %26 = vector.extract_strided_slice %1 {offsets = [0, 20], sizes = [4, 384], strides = [1, 1]} : vector<4x512xbf16> to vector<4x384xbf16>
    %c5 = arith.constant 5 : index
    %c0_17 = arith.constant 0 : index
    %c0_18 = arith.constant 0 : index
    %27 = vector.load %arg2[%c5, %c0_17, %c0_18] : memref<9x8x4xbf16, #tpu.memory_space<vmem>>, vector<1x8x4xbf16>
    %28 = vector.shape_cast %27 : vector<1x8x4xbf16> to vector<8x4xbf16>
    %cst_19 = arith.constant dense<0.000000e+00> : vector<8x384xf32>
    %29 = tpu.matmul %28, %26, %cst_19 {dimension_numbers = #tpu.dot_dimension_numbers<[1], [0], [0], [1], [0, 0, 1, 1], [], []>} : vector<8x4xbf16>, vector<4x384xbf16>, vector<8x384xf32> -> vector<8x384xf32>
    %30 = arith.addf %25, %29 : vector<8x384xf32>
    %31 = vector.extract_strided_slice %1 {offsets = [0, 36], sizes = [4, 384], strides = [1, 1]} : vector<4x512xbf16> to vector<4x384xbf16>
    %c6 = arith.constant 6 : index
    %c0_20 = arith.constant 0 : index
    %c0_21 = arith.constant 0 : index
    %32 = vector.load %arg2[%c6, %c0_20, %c0_21] : memref<9x8x4xbf16, #tpu.memory_space<vmem>>, vector<1x8x4xbf16>
    %33 = vector.shape_cast %32 : vector<1x8x4xbf16> to vector<8x4xbf16>
    %cst_22 = arith.constant dense<0.000000e+00> : vector<8x384xf32>
    %34 = tpu.matmul %33, %31, %cst_22 {dimension_numbers = #tpu.dot_dimension_numbers<[1], [0], [0], [1], [0, 0, 1, 1], [], []>} : vector<8x4xbf16>, vector<4x384xbf16>, vector<8x384xf32> -> vector<8x384xf32>
    %35 = arith.addf %30, %34 : vector<8x384xf32>
    %36 = vector.extract_strided_slice %1 {offsets = [0, 37], sizes = [4, 384], strides = [1, 1]} : vector<4x512xbf16> to vector<4x384xbf16>
    %c7 = arith.constant 7 : index
    %c0_23 = arith.constant 0 : index
    %c0_24 = arith.constant 0 : index
    %37 = vector.load %arg2[%c7, %c0_23, %c0_24] : memref<9x8x4xbf16, #tpu.memory_space<vmem>>, vector<1x8x4xbf16>
    %38 = vector.shape_cast %37 : vector<1x8x4xbf16> to vector<8x4xbf16>
    %cst_25 = arith.constant dense<0.000000e+00> : vector<8x384xf32>
    %39 = tpu.matmul %38, %36, %cst_25 {dimension_numbers = #tpu.dot_dimension_numbers<[1], [0], [0], [1], [0, 0, 1, 1], [], []>} : vector<8x4xbf16>, vector<4x384xbf16>, vector<8x384xf32> -> vector<8x384xf32>
    %40 = arith.addf %35, %39 : vector<8x384xf32>
    %41 = vector.extract_strided_slice %1 {offsets = [0, 38], sizes = [4, 384], strides = [1, 1]} : vector<4x512xbf16> to vector<4x384xbf16>
    %c8 = arith.constant 8 : index
    %c0_26 = arith.constant 0 : index
    %c0_27 = arith.constant 0 : index
    %42 = vector.load %arg2[%c8, %c0_26, %c0_27] : memref<9x8x4xbf16, #tpu.memory_space<vmem>>, vector<1x8x4xbf16>
    %43 = vector.shape_cast %42 : vector<1x8x4xbf16> to vector<8x4xbf16>
    %cst_28 = arith.constant dense<0.000000e+00> : vector<8x384xf32>
    %44 = tpu.matmul %43, %41, %cst_28 {dimension_numbers = #tpu.dot_dimension_numbers<[1], [0], [0], [1], [0, 0, 1, 1], [], []>} : vector<8x4xbf16>, vector<4x384xbf16>, vector<8x384xf32> -> vector<8x384xf32>
    %45 = arith.addf %40, %44 : vector<8x384xf32>
    %c0_29 = arith.constant 0 : index
    %c0_30 = arith.constant 0 : index
    %46 = vector.load %arg3[%c0_29, %c0_30] : memref<8x1xf32, #tpu.memory_space<vmem>>, vector<8x1xf32>
    %47 = vector.broadcast %46 : vector<8x1xf32> to vector<8x384xf32>
    %48 = arith.addf %45, %47 : vector<8x384xf32>
    %cst_31 = arith.constant 0.000000e+00 : f32
    %49 = vector.broadcast %cst_31 : f32 to vector<8x384xf32>
    %50 = arith.maximumf %48, %49 : vector<8x384xf32>
    %51 = arith.truncf %50 : vector<8x384xf32> to vector<8x384xbf16>
    %c0_32 = arith.constant 0 : index
    %c0_33 = arith.constant 0 : index
    %c0_34 = arith.constant 0 : index
    %52 = vector.load %arg4[%c0_32, %c0_33, %c0_34] : memref<1x8x384xbf16, #tpu.memory_space<vmem>>, vector<1x8x384xbf16>
    %53 = vector.shape_cast %52 : vector<1x8x384xbf16> to vector<8x384xbf16>
    %54 = vector.shape_cast %51 : vector<8x384xbf16> to vector<1x8x384xbf16>
    tpu.vector_store %arg4[%c0_32, %c0_33, %c0_34], %54 {strides = array<i32>} : memref<1x8x384xbf16, #tpu.memory_space<vmem>>, vector<1x8x384xbf16>,
    return
  }
  func.func @transform_0(%arg0: i32) -> (i32, i32, i32) {
    %c0_i32 = arith.constant 0 : i32
    %c0_i32_0 = arith.constant 0 : i32
    %c0_i32_1 = arith.constant 0 : i32
    return %arg0, %c0_i32, %c0_i32_0 : i32, i32, i32
  }
  func.func @transform_1(%arg0: i32) -> (i32, i32, i32) {
    %c0_i32 = arith.constant 0 : i32
    %c0_i32_0 = arith.constant 0 : i32
    %c0_i32_1 = arith.constant 0 : i32
    %c0_i32_2 = arith.constant 0 : i32
    return %c0_i32, %c0_i32_0, %c0_i32_1 : i32, i32, i32
  }
  func.func @transform_2(%arg0: i32) -> (i32, i32) {
    %c0_i32 = arith.constant 0 : i32
    %c0_i32_0 = arith.constant 0 : i32
    %c0_i32_1 = arith.constant 0 : i32
    return %c0_i32, %c0_i32_0 : i32, i32
  }
  func.func @transform_3(%arg0: i32) -> (i32, i32, i32) {
    %c0_i32 = arith.constant 0 : i32
    %c0_i32_0 = arith.constant 0 : i32
    %c0_i32_1 = arith.constant 0 : i32
    return %arg0, %c0_i32, %c0_i32_0 : i32, i32, i32
  }
}

</mosaic_0001>

<llo_original>
// kernel: tpu_custom_call.1
$region0: #{tpu_custom_call.1}
  #allocation0 [shape = 'u32[]', space=smem, size = 0x4, offset = 0x4, fixed_abs, tag = 'smem constant byte address 0x4 - core index']
  #allocation1 [shape = 'u32[144,128]{1,0:T(1,128)}', space=vmem, size = 0x12000, scoped, tag = 'internal scratch']
  %s0 = inlined_call_operand.vmem [shape: bf16[2,4,512], index: 0, kind: input, shape index: {}]
  %s1 = inlined_call_operand.vmem [shape: bf16[9,8,4], index: 1, kind: input, shape index: {}]
  %s2 = inlined_call_operand.vmem [shape: f32[8,1], index: 2, kind: input, shape index: {}]
  %s3 = inlined_call_operand.hbm [shape: bf16[2,8,384], index: 3, kind: output, shape index: {}]
  %s4 = sld [smem:[#allocation0]]
  $region45: #{tpu_custom_call.1} parent=0
    _
  %s6 = ssub.s32 1, %s4
  %s7 = scalar_select 0, %s6, %s4
  $region1: #{tpu_custom_call.1} parent=0
    #allocation2 [shape = 'u8[12288]{0}', space=vmem, size = 0x3000, scoped, tag = 'output window, operand 0']
    #allocation3 [shape = 's32[2]{0}', space=sflag, size = 0x8, scoped, tag = 'scoped memory for tpu_custom_call.1']
    %8 = vsyncpa [#allocation3], 0
    %s9 = scalar_lea.sflag [#allocation3], 1
    %10 = vsyncpa %s9, 0
    loop: start=0, step=1, limit=4
    $region2: #{tpu_custom_call.1} parent=1 // loop_pre_header
      _
    $region3: #{tpu_custom_call.1} parent=1 // loop_header
      %s12 = sphi 0, %s16
      %p13 = scmp.ge.s32.totalorder %s12, 4
      %s22 = sphi 0, %s24
      %s25 = sphi 0, %s22
      %s26 = sphi 0, %s25
      %s42 = sphi 0, %s26
      %s46 = sphi 0, %s46
      %s48 = sphi 0, %s46
      %s49 = sphi 0, %s48
      %s63 = sphi 0, %s49
      %s67 = sphi 0, %s67
      %s69 = sphi 0, %s67
      %s70 = sphi 0, %s69
      %s84 = sphi 0, %s70
      %s90 = sphi 0, %s92
      %s93 = sphi 0, %s90
      %s94 = sphi 0, %s93
      %s110 = sphi 0, %s94
    $region4: #{tpu_custom_call.1} parent=1 // loop_header_branch
      %15 = sbr.rel (%p13) target = $region8
    $region5: #{tpu_custom_call.1} parent=1 // loop_body
      %s17 = ssub.s32 %s12, 1
      %s18 = ssub.s32 %s12, 2
      %s19 = sadd.s32 %s12, 1
      %s20 = ssub.s32 %s12, %s19
      %p21 = scmp.eq.s32.totalorder %s20, 0
      %s23 = sadd.s32 %s22, 1
      %s24 = scalar_select %p21, %s22, %s23
      %p27 = pneg %p21
      %p28 = scmp.eq.s32.totalorder %s12, 1
      %p29 = por %p27, %p28
      %p30 = scmp.ne.s32.totalorder %s22, %s25
      %p31 = scmp.eq.s32.totalorder %s12, 0
      %p32 = por %p30, %p31
      %p33 = scmp.ne.s32.totalorder %s22, %s25
      %p34 = scmp.eq.s32.totalorder %s17, 1
      %p35 = por %p33, %p34
      %p36 = scmp.ne.s32.totalorder %s25, %s26
      %p37 = scmp.eq.s32.totalorder %s17, 0
      %p38 = por %p36, %p37
      %p39 = scmp.ne.s32.totalorder %s25, %s26
      %p40 = scmp.eq.s32.totalorder %s18, 1
      %p41 = por %p39, %p40
      %p43 = scmp.ne.s32.totalorder %s26, %s42
      %p44 = scmp.eq.s32.totalorder %s18, 0
      %p45 = por %p43, %p44
      %s47 = sadd.s32 %s46, 1
      %p50 = scmp.eq.s32.totalorder %s12, 1
      %p51 = scmp.ne.s32.totalorder %s46, %s48
      %p52 = scmp.eq.s32.totalorder %s12, 0
      %p53 = por %p51, %p52
      %p54 = scmp.ne.s32.totalorder %s46, %s48
      %p55 = scmp.eq.s32.totalorder %s17, 1
      %p56 = por %p54, %p55
      %p57 = scmp.ne.s32.totalorder %s48, %s49
      %p58 = scmp.eq.s32.totalorder %s17, 0
      %p59 = por %p57, %p58
      %p60 = scmp.ne.s32.totalorder %s48, %s49
      %p61 = scmp.eq.s32.totalorder %s18, 1
      %p62 = por %p60, %p61
      %p64 = scmp.ne.s32.totalorder %s49, %s63
      %p65 = scmp.eq.s32.totalorder %s18, 0
      %p66 = por %p64, %p65
      %s68 = sadd.s32 %s67, 1
      %p71 = scmp.eq.s32.totalorder %s12, 1
      %p72 = scmp.ne.s32.totalorder %s67, %s69
      %p73 = scmp.eq.s32.totalorder %s12, 0
      %p74 = por %p72, %p73
      %p75 = scmp.ne.s32.totalorder %s67, %s69
      %p76 = scmp.eq.s32.totalorder %s17, 1
      %p77 = por %p75, %p76
      %p78 = scmp.ne.s32.totalorder %s69, %s70
      %p79 = scmp.eq.s32.totalorder %s17, 0
      %p80 = por %p78, %p79
      %p81 = scmp.ne.s32.totalorder %s69, %s70
      %p82 = scmp.eq.s32.totalorder %s18, 1
      %p83 = por %p81, %p82
      %p85 = scmp.ne.s32.totalorder %s70, %s84
      %p86 = scmp.eq.s32.totalorder %s18, 0
      %p87 = por %p85, %p86
      %s88 = ssub.s32 %s12, %s19
      %p89 = scmp.eq.s32.totalorder %s88, 0
      %s91 = sadd.s32 %s90, 1
      %s92 = scalar_select %p89, %s90, %s91
      %p95 = pneg %p89
      %p96 = scmp.eq.s32.totalorder %s12, 1
      %p97 = por %p95, %p96
      %p98 = scmp.ne.s32.totalorder %s90, %s93
      %p99 = scmp.eq.s32.totalorder %s12, 0
      %p100 = por %p98, %p99
      %p101 = scmp.ne.s32.totalorder %s90, %s93
      %p102 = scmp.eq.s32.totalorder %s17, 1
      %p103 = por %p101, %p102
      %p104 = scmp.ne.s32.totalorder %s93, %s94
      %p105 = scmp.eq.s32.totalorder %s17, 0
      %p106 = por %p104, %p105
      %p107 = scmp.ne.s32.totalorder %s93, %s94
      %p108 = scmp.eq.s32.totalorder %s18, 1
      %p109 = por %p107, %p108
      %p111 = scmp.ne.s32.totalorder %s94, %s110
      %p112 = scmp.eq.s32.totalorder %s18, 0
      %p113 = por %p111, %p112
      %p114 = scmp.le.s32.totalorder 1, %s12
      %p115 = scmp.lt.s32.totalorder %s12, 3
      %p116 = pnand %p114, %p115
      %p117 = pneg %p116
      // Predicated region
      $region9: #{tpu_custom_call.1} parent=5 // pred_check
        _
      $region10: #{tpu_custom_call.1} parent=5 // pred_check_branch
        %119 = sbr.rel (%p116) target = $region12
      $region11: #{tpu_custom_call.1} parent=5 // pred_region
        %s120 = ssub.s32 %s12, 1
        // Predicated region
        $region13: #{tpu_custom_call.1} parent=11 // pred_check
          %p121 = pneg %p59
        $region14: #{tpu_custom_call.1} parent=11 // pred_check_branch
          %123 = sbr.rel (%p121) target = $region16
        $region15: #{tpu_custom_call.1} parent=11 // pred_region
          _
        $region16: #{tpu_custom_call.1} parent=11 // pred_fallthru
          _
        // Predicated region
        $region17: #{tpu_custom_call.1} parent=11 // pred_check
          %p124 = pneg %p80
        $region18: #{tpu_custom_call.1} parent=11 // pred_check_branch
          %126 = sbr.rel (%p124) target = $region20
        $region19: #{tpu_custom_call.1} parent=11 // pred_region
          _
        $region20: #{tpu_custom_call.1} parent=11 // pred_fallthru
          _
      $region12: #{tpu_custom_call.1} parent=5 // pred_fallthru
        _
      %p127 = scmp.lt.s32.totalorder %s12, 2
      // Predicated region
      $region21: #{tpu_custom_call.1} parent=5 // pred_check
        %p128 = pneg %p127
      $region22: #{tpu_custom_call.1} parent=5 // pred_check_branch
        %130 = sbr.rel (%p128) target = $region24
      $region23: #{tpu_custom_call.1} parent=5 // pred_region
        // Predicated region
        $region25: #{tpu_custom_call.1} parent=23 // pred_check
          %p131 = pneg %p32
        $region26: #{tpu_custom_call.1} parent=23 // pred_check_branch
          %133 = sbr.rel (%p131) target = $region28
        $region27: #{tpu_custom_call.1} parent=23 // pred_region
          %p134 = scmp.lt.s32.totalorder %s12, 1
          %s135 = scalar_select %p134, %s12, 1
          %s136 = smul.addr %s135, 4
          %s137 = smul.addr %s136, 2
          %s138 = scalar_lea.vmem %s0, %s137
        $region28: #{tpu_custom_call.1} parent=23 // pred_fallthru
          _
      $region24: #{tpu_custom_call.1} parent=5 // pred_fallthru
        _
      %p139 = scmp.le.s32.totalorder 1, %s12
      %p140 = scmp.lt.s32.totalorder %s12, 3
      %p141 = pnand %p139, %p140
      %p142 = pneg %p141
      // Predicated region
      $region29: #{tpu_custom_call.1} parent=5 // pred_check
        _
      $region30: #{tpu_custom_call.1} parent=5 // pred_check_branch
        %144 = sbr.rel (%p141) target = $region32
      $region31: #{tpu_custom_call.1} parent=5 // pred_region
        %s145 = ssub.s32 %s12, 1
        %p146 = scmp.lt.s32.totalorder %s17, 1
        %s147 = scalar_select %p146, %s17, 1
        %s148 = smul.addr %s147, 4
        %s149 = smul.addr %s148, 2
        %s150 = scalar_lea.vmem %s0, %s149
        %p151 = pneg %p38
        %p152 = pneg %p35
        %p153 = pneg %p59
        %p154 = pneg %p56
        %p155 = pneg %p80
        %p156 = pneg %p77
        %p157 = pneg %p106
        %p158 = pneg %p103
        %s159 = sand.u32 %s93, 1
        %s160 = scalar_lea.sflag [#allocation3], %s159
        %s161 = sand.u32 %s93, 1
        %s162 = smul.addr %s161, 12
        %s163 = scalar_lea.vmem [#allocation2], %s162
        %p164 = scmp.lt.s32.totalorder %s17, 1
        %s165 = scalar_select %p164, %s17, 1
        %s166 = smul.addr %s165, 4
        %s167 = smul.addr %s166, 2
        %s168 = scalar_lea.vmem %s0, %s167
        %v170 = vld [vmem:[%s168] sm:$0xff]
        %v171 = vld [vmem:[%s1] sm:$0xf]
        %s172 = scalar_lea.vmem %s1, 4
        %v173 = vld [vmem:[%s172] sm:$0xf]
        %v175 = vcombine.high %v170, %v170
        %v177 = vunpack.c.l.s4 1983009808
        %v178 = vunpack.c.0.s8 %v177
        %v179 = vlaneseq
        %v180 = vshrl.u32 %v179, 7
        %v181 = vsub.s32 %v178, %v180
        %v182 = vrot.slane %v170, %v181
        %v184 = vunpack.c.l.s4 1983009808
        %v185 = vunpack.c.0.s8 %v184
        %v186 = vlaneseq
        %v187 = vshrl.u32 %v186, 7
        %v188 = vsub.s32 %v185, %v187
        %v189 = vrot.slane %v175, %v188
        %v190 = vcombine.high %v182, %v182
        %v191 = vcombine.high %v189, %v189
        %192 = vrot.lane.b32.xlu0 %v182, 127
        %v193 = vpop.permute.xlu0 %192
        %194 = vrot.lane.b32.xlu0 %v190, 127
        %v195 = vpop.permute.xlu0 %194
        %196 = vrot.lane.b32.xlu0 %v189, 127
        %v197 = vpop.permute.xlu0 %196
        %198 = vrot.lane.b32.xlu0 %v191, 127
        %v199 = vpop.permute.xlu0 %198
        %vm200 = vcmask 1039360
        %v201 = vsel %vm200, %v193, %v195
        %v202 = vsel %vm200, %v195, %v197
        %v203 = vsel %vm200, %v197, %v199
        %vm204 = vcmask 31744
        %v206 = vsel %vm204, %v173, 0
        %vm208 = vcmask 1041408
        %v210 = vsel %vm208, %v201, 0
        %v213 = vsel %vm208, %v202, 0
        %v216 = vsel %vm208, %v203, 0
        %218 = vmatprep.subr.bf16.mxu0 %v213
        %219 = vmatpush1.bf16.msra.mxu0 %v210
        %220 = vmatprep.subr.bf16.mxu0 0
        %221 = vmatpush1.bf16.msra.mxu0 0
        %222 = vmatprep.subr.bf16.mxu0 0
        %223 = vmatpush1.bf16.msra.mxu0 0
        %224 = vmatprep.subr.bf16.mxu0 0
        %225 = vmatpush1.bf16.msra.mxu0 0
        %226 = vmatprep.subr.bf16.mxu0 0
        %227 = vmatpush1.bf16.msra.mxu0 0
        %228 = vmatprep.subr.bf16.mxu0 0
        %229 = vmatpush1.bf16.msra.mxu0 0
        %230 = vmatprep.subr.bf16.mxu0 0
        %231 = vmatpush1.bf16.msra.mxu0 0
        %232 = vmatprep.subr.bf16.mxu0 0
        %233 = vmatpush1.bf16.msra.mxu0 0
        %234 = vmatprep.subr.bf16.mxu0 0
        %235 = vmatpush1.bf16.msra.mxu0 0
        %236 = vmatprep.subr.bf16.mxu0 0
        %237 = vmatpush1.bf16.msra.mxu0 0
        %238 = vmatprep.subr.bf16.mxu0 0
        %239 = vmatpush1.bf16.msra.mxu0 0
        %240 = vmatprep.subr.bf16.mxu0 0
        %241 = vmatpush1.bf16.msra.mxu0 0
        %242 = vmatprep.subr.bf16.mxu0 0
        %243 = vmatpush1.bf16.msra.mxu0 0
        %244 = vmatprep.subr.bf16.mxu0 0
        %245 = vmatpush1.bf16.msra.mxu0 0
        %246 = vmatprep.subr.bf16.mxu0 0
        %247 = vmatpush1.bf16.msra.mxu0 0
        %248 = vmatprep.subr.bf16.mxu0 0
        %249 = vmatpush1.bf16.msra.mxu0 0
        %250 = vmatprep.mubr.bf16.mxu0 0
        %251 = vmatmul.mubr.bf16.gmra.mrb[0].mxu0 %v206
        %v252 = vpop.f32.mrb[0].mxu0
        %v253 = vadd.f32 0.0, %v252
        %v254 = vpop.f32.mrb[0].mxu0
        %v255 = vadd.f32 0.0, %v254
        %v256 = vpop.f32.mrb[0].mxu0
        %v257 = vpop.f32.mrb[0].mxu0
        %258 = vdwg.mxu0
        %259 = vmatprep.subr.bf16.mxu0 0
        %260 = vmatpush1.bf16.msra.mxu0 %v216
        %261 = vmatprep.subr.bf16.mxu0 0
        %262 = vmatpush1.bf16.msra.mxu0 0
        %263 = vmatprep.subr.bf16.mxu0 0
        %264 = vmatpush1.bf16.msra.mxu0 0
        %265 = vmatprep.subr.bf16.mxu0 0
        %266 = vmatpush1.bf16.msra.mxu0 0
        %267 = vmatprep.subr.bf16.mxu0 0
        %268 = vmatpush1.bf16.msra.mxu0 0
        %269 = vmatprep.subr.bf16.mxu0 0
        %270 = vmatpush1.bf16.msra.mxu0 0
        %271 = vmatprep.subr.bf16.mxu0 0
        %272 = vmatpush1.bf16.msra.mxu0 0
        %273 = vmatprep.subr.bf16.mxu0 0
        %274 = vmatpush1.bf16.msra.mxu0 0
        %275 = vmatprep.subr.bf16.mxu0 0
        %276 = vmatpush1.bf16.msra.mxu0 0
        %277 = vmatprep.subr.bf16.mxu0 0
        %278 = vmatpush1.bf16.msra.mxu0 0
        %279 = vmatprep.subr.bf16.mxu0 0
        %280 = vmatpush1.bf16.msra.mxu0 0
        %281 = vmatprep.subr.bf16.mxu0 0
        %282 = vmatpush1.bf16.msra.mxu0 0
        %283 = vmatprep.subr.bf16.mxu0 0
        %284 = vmatpush1.bf16.msra.mxu0 0
        %285 = vmatprep.subr.bf16.mxu0 0
        %286 = vmatpush1.bf16.msra.mxu0 0
        %287 = vmatprep.subr.bf16.mxu0 0
        %288 = vmatpush1.bf16.msra.mxu0 0
        %289 = vmatprep.subr.bf16.mxu0 0
        %290 = vmatpush1.bf16.msra.mxu0 0
        %291 = vmatprep.mubr.bf16.mxu0 0
        %292 = vmatmul.mubr.bf16.gmra.mrb[0].mxu0 %v206
        %v293 = vpop.f32.mrb[0].mxu0
        %v294 = vadd.f32 0.0, %v293
        %v295 = vpop.f32.mrb[0].mxu0
        %v296 = vpop.f32.mrb[0].mxu0
        %v297 = vpop.f32.mrb[0].mxu0
        %298 = vdwg.mxu0
        %v300 = vsel %vm204, %v171, 0
        %v303 = vsel %vm208, %v182, 0
        %v306 = vsel %vm208, %v190, 0
        %v309 = vsel %vm208, %v189, 0
        %311 = vmatprep.subr.bf16.mxu0 %v306
        %312 = vmatpush1.bf16.msra.mxu0 %v303
        %313 = vmatprep.subr.bf16.mxu0 0
        %314 = vmatpush1.bf16.msra.mxu0 0
        %315 = vmatprep.subr.bf16.mxu0 0
        %316 = vmatpush1.bf16.msra.mxu0 0
        %317 = vmatprep.subr.bf16.mxu0 0
        %318 = vmatpush1.bf16.msra.mxu0 0
        %319 = vmatprep.subr.bf16.mxu0 0
        %320 = vmatpush1.bf16.msra.mxu0 0
        %321 = vmatprep.subr.bf16.mxu0 0
        %322 = vmatpush1.bf16.msra.mxu0 0
        %323 = vmatprep.subr.bf16.mxu0 0
        %324 = vmatpush1.bf16.msra.mxu0 0
        %325 = vmatprep.subr.bf16.mxu0 0
        %326 = vmatpush1.bf16.msra.mxu0 0
        %327 = vmatprep.subr.bf16.mxu0 0
        %328 = vmatpush1.bf16.msra.mxu0 0
        %329 = vmatprep.subr.bf16.mxu0 0
        %330 = vmatpush1.bf16.msra.mxu0 0
        %331 = vmatprep.subr.bf16.mxu0 0
        %332 = vmatpush1.bf16.msra.mxu0 0
        %333 = vmatprep.subr.bf16.mxu0 0
        %334 = vmatpush1.bf16.msra.mxu0 0
        %335 = vmatprep.subr.bf16.mxu0 0
        %336 = vmatpush1.bf16.msra.mxu0 0
        %337 = vmatprep.subr.bf16.mxu0 0
        %338 = vmatpush1.bf16.msra.mxu0 0
        %339 = vmatprep.subr.bf16.mxu0 0
        %340 = vmatpush1.bf16.msra.mxu0 0
        %341 = vmatprep.subr.bf16.mxu0 0
        %342 = vmatpush1.bf16.msra.mxu0 0
        %343 = vmatprep.mubr.bf16.mxu0 0
        %344 = vmatmul.mubr.bf16.gmra.mrb[0].mxu0 %v300
        %v345 = vpop.f32.mrb[0].mxu0
        %v346 = vadd.f32 %v253, %v345
        %v347 = vpop.f32.mrb[0].mxu0
        %v348 = vadd.f32 %v255, %v347
        %v349 = vpop.f32.mrb[0].mxu0
        %v350 = vpop.f32.mrb[0].mxu0
        %351 = vdwg.mxu0
        %352 = vmatprep.subr.bf16.mxu0 0
        %353 = vmatpush1.bf16.msra.mxu0 %v309
        %354 = vmatprep.subr.bf16.mxu0 0
        %355 = vmatpush1.bf16.msra.mxu0 0
        %356 = vmatprep.subr.bf16.mxu0 0
        %357 = vmatpush1.bf16.msra.mxu0 0
        %358 = vmatprep.subr.bf16.mxu0 0
        %359 = vmatpush1.bf16.msra.mxu0 0
        %360 = vmatprep.subr.bf16.mxu0 0
        %361 = vmatpush1.bf16.msra.mxu0 0
        %362 = vmatprep.subr.bf16.mxu0 0
        %363 = vmatpush1.bf16.msra.mxu0 0
        %364 = vmatprep.subr.bf16.mxu0 0
        %365 = vmatpush1.bf16.msra.mxu0 0
        %366 = vmatprep.subr.bf16.mxu0 0
        %367 = vmatpush1.bf16.msra.mxu0 0
        %368 = vmatprep.subr.bf16.mxu0 0
        %369 = vmatpush1.bf16.msra.mxu0 0
        %370 = vmatprep.subr.bf16.mxu0 0
        %371 = vmatpush1.bf16.msra.mxu0 0
        %372 = vmatprep.subr.bf16.mxu0 0
        %373 = vmatpush1.bf16.msra.mxu0 0
        %374 = vmatprep.subr.bf16.mxu0 0
        %375 = vmatpush1.bf16.msra.mxu0 0
        %376 = vmatprep.subr.bf16.mxu0 0
        %377 = vmatpush1.bf16.msra.mxu0 0
        %378 = vmatprep.subr.bf16.mxu0 0
        %379 = vmatpush1.bf16.msra.mxu0 0
        %380 = vmatprep.subr.bf16.mxu0 0
        %381 = vmatpush1.bf16.msra.mxu0 0
        %382 = vmatprep.subr.bf16.mxu0 0
        %383 = vmatpush1.bf16.msra.mxu0 0
        %384 = vmatprep.mubr.bf16.mxu0 0
        %385 = vmatmul.mubr.bf16.gmra.mrb[0].mxu0 %v300
        %v386 = vpop.f32.mrb[0].mxu0
        %v387 = vadd.f32 %v294, %v386
        %v388 = vpop.f32.mrb[0].mxu0
        %v389 = vpop.f32.mrb[0].mxu0
        %v390 = vpop.f32.mrb[0].mxu0
        %391 = vdwg.mxu0
        %s392 = scalar_lea.vmem %s1, 8
        %v393 = vld [vmem:[%s392] sm:$0xf]
        %394 = vrot.lane.b32.xlu0 %v182, 126
        %v395 = vpop.permute.xlu0 %394
        %396 = vrot.lane.b32.xlu0 %v190, 126
        %v397 = vpop.permute.xlu0 %396
        %398 = vrot.lane.b32.xlu0 %v189, 126
        %v399 = vpop.permute.xlu0 %398
        %400 = vrot.lane.b32.xlu0 %v191, 126
        %v401 = vpop.permute.xlu0 %400
        %vm402 = vcmask 1031168
        %v403 = vsel %vm402, %v395, %v397
        %v404 = vsel %vm402, %v397, %v399
        %v405 = vsel %vm402, %v399, %v401
        %v407 = vsel %vm204, %v393, 0
        %v410 = vsel %vm208, %v403, 0
        %v413 = vsel %vm208, %v404, 0
        %v416 = vsel %vm208, %v405, 0
        %418 = vmatprep.subr.bf16.mxu0 %v413
        %419 = vmatpush1.bf16.msra.mxu0 %v410
        %420 = vmatprep.subr.bf16.mxu0 0
        %421 = vmatpush1.bf16.msra.mxu0 0
        %422 = vmatprep.subr.bf16.mxu0 0
        %423 = vmatpush1.bf16.msra.mxu0 0
        %424 = vmatprep.subr.bf16.mxu0 0
        %425 = vmatpush1.bf16.msra.mxu0 0
        %426 = vmatprep.subr.bf16.mxu0 0
        %427 = vmatpush1.bf16.msra.mxu0 0
        %428 = vmatprep.subr.bf16.mxu0 0
        %429 = vmatpush1.bf16.msra.mxu0 0
        %430 = vmatprep.subr.bf16.mxu0 0
        %431 = vmatpush1.bf16.msra.mxu0 0
        %432 = vmatprep.subr.bf16.mxu0 0
        %433 = vmatpush1.bf16.msra.mxu0 0
        %434 = vmatprep.subr.bf16.mxu0 0
        %435 = vmatpush1.bf16.msra.mxu0 0
        %436 = vmatprep.subr.bf16.mxu0 0
        %437 = vmatpush1.bf16.msra.mxu0 0
        %438 = vmatprep.subr.bf16.mxu0 0
        %439 = vmatpush1.bf16.msra.mxu0 0
        %440 = vmatprep.subr.bf16.mxu0 0
        %441 = vmatpush1.bf16.msra.mxu0 0
        %442 = vmatprep.subr.bf16.mxu0 0
        %443 = vmatpush1.bf16.msra.mxu0 0
        %444 = vmatprep.subr.bf16.mxu0 0
        %445 = vmatpush1.bf16.msra.mxu0 0
        %446 = vmatprep.subr.bf16.mxu0 0
        %447 = vmatpush1.bf16.msra.mxu0 0
        %448 = vmatprep.subr.bf16.mxu0 0
        %449 = vmatpush1.bf16.msra.mxu0 0
        %450 = vmatprep.mubr.bf16.mxu0 0
        %451 = vmatmul.mubr.bf16.gmra.mrb[0].mxu0 %v407
        %v452 = vpop.f32.mrb[0].mxu0
        %v453 = vadd.f32 0.0, %v452
        %v454 = vpop.f32.mrb[0].mxu0
        %v455 = vadd.f32 0.0, %v454
        %v456 = vpop.f32.mrb[0].mxu0
        %v457 = vpop.f32.mrb[0].mxu0
        %458 = vdwg.mxu0
        %459 = vmatprep.subr.bf16.mxu0 0
        %460 = vmatpush1.bf16.msra.mxu0 %v416
        %461 = vmatprep.subr.bf16.mxu0 0
        %462 = vmatpush1.bf16.msra.mxu0 0
        %463 = vmatprep.subr.bf16.mxu0 0
        %464 = vmatpush1.bf16.msra.mxu0 0
        %465 = vmatprep.subr.bf16.mxu0 0
        %466 = vmatpush1.bf16.msra.mxu0 0
        %467 = vmatprep.subr.bf16.mxu0 0
        %468 = vmatpush1.bf16.msra.mxu0 0
        %469 = vmatprep.subr.bf16.mxu0 0
        %470 = vmatpush1.bf16.msra.mxu0 0
        %471 = vmatprep.subr.bf16.mxu0 0
        %472 = vmatpush1.bf16.msra.mxu0 0
        %473 = vmatprep.subr.bf16.mxu0 0
        %474 = vmatpush1.bf16.msra.mxu0 0
        %475 = vmatprep.subr.bf16.mxu0 0
        %476 = vmatpush1.bf16.msra.mxu0 0
        %477 = vmatprep.subr.bf16.mxu0 0
        %478 = vmatpush1.bf16.msra.mxu0 0
        %479 = vmatprep.subr.bf16.mxu0 0
        %480 = vmatpush1.bf16.msra.mxu0 0
        %481 = vmatprep.subr.bf16.mxu0 0
        %482 = vmatpush1.bf16.msra.mxu0 0
        %483 = vmatprep.subr.bf16.mxu0 0
        %484 = vmatpush1.bf16.msra.mxu0 0
        %485 = vmatprep.subr.bf16.mxu0 0
        %486 = vmatpush1.bf16.msra.mxu0 0
        %487 = vmatprep.subr.bf16.mxu0 0
        %488 = vmatpush1.bf16.msra.mxu0 0
        %489 = vmatprep.subr.bf16.mxu0 0
        %490 = vmatpush1.bf16.msra.mxu0 0
        %491 = vmatprep.mubr.bf16.mxu0 0
        %492 = vmatmul.mubr.bf16.gmra.mrb[0].mxu0 %v407
        %v493 = vpop.f32.mrb[0].mxu0
        %v494 = vadd.f32 0.0, %v493
        %v495 = vpop.f32.mrb[0].mxu0
        %v496 = vpop.f32.mrb[0].mxu0
        %v497 = vpop.f32.mrb[0].mxu0
        %498 = vdwg.mxu0
        %v499 = vadd.f32 %v346, %v453
        %v500 = vadd.f32 %v348, %v455
        %v501 = vadd.f32 %v387, %v494
        %s502 = scalar_lea.vmem %s1, 12
        %v503 = vld [vmem:[%s502] sm:$0xf]
        %504 = vrot.lane.b32.xlu0 %v182, 110
        %v505 = vpop.permute.xlu0 %504
        %506 = vrot.lane.b32.xlu0 %v190, 110
        %v507 = vpop.permute.xlu0 %506
        %508 = vrot.lane.b32.xlu0 %v189, 110
        %v509 = vpop.permute.xlu0 %508
        %510 = vrot.lane.b32.xlu0 %v191, 110
        %v511 = vpop.permute.xlu0 %510
        %vm512 = vcmask 900096
        %v513 = vsel %vm512, %v505, %v507
        %v514 = vsel %vm512, %v507, %v509
        %v515 = vsel %vm512, %v509, %v511
        %v517 = vsel %vm204, %v503, 0
        %v520 = vsel %vm208, %v513, 0
        %v523 = vsel %vm208, %v514, 0
        %v526 = vsel %vm208, %v515, 0
        %528 = vmatprep.subr.bf16.mxu0 %v523
        %529 = vmatpush1.bf16.msra.mxu0 %v520
        %530 = vmatprep.subr.bf16.mxu0 0
        %531 = vmatpush1.bf16.msra.mxu0 0
        %532 = vmatprep.subr.bf16.mxu0 0
        %533 = vmatpush1.bf16.msra.mxu0 0
        %534 = vmatprep.subr.bf16.mxu0 0
        %535 = vmatpush1.bf16.msra.mxu0 0
        %536 = vmatprep.subr.bf16.mxu0 0
        %537 = vmatpush1.bf16.msra.mxu0 0
        %538 = vmatprep.subr.bf16.mxu0 0
        %539 = vmatpush1.bf16.msra.mxu0 0
        %540 = vmatprep.subr.bf16.mxu0 0
        %541 = vmatpush1.bf16.msra.mxu0 0
        %542 = vmatprep.subr.bf16.mxu0 0
        %543 = vmatpush1.bf16.msra.mxu0 0
        %544 = vmatprep.subr.bf16.mxu0 0
        %545 = vmatpush1.bf16.msra.mxu0 0
        %546 = vmatprep.subr.bf16.mxu0 0
        %547 = vmatpush1.bf16.msra.mxu0 0
        %548 = vmatprep.subr.bf16.mxu0 0
        %549 = vmatpush1.bf16.msra.mxu0 0
        %550 = vmatprep.subr.bf16.mxu0 0
        %551 = vmatpush1.bf16.msra.mxu0 0
        %552 = vmatprep.subr.bf16.mxu0 0
        %553 = vmatpush1.bf16.msra.mxu0 0
        %554 = vmatprep.subr.bf16.mxu0 0
        %555 = vmatpush1.bf16.msra.mxu0 0
        %556 = vmatprep.subr.bf16.mxu0 0
        %557 = vmatpush1.bf16.msra.mxu0 0
        %558 = vmatprep.subr.bf16.mxu0 0
        %559 = vmatpush1.bf16.msra.mxu0 0
        %560 = vmatprep.mubr.bf16.mxu0 0
        %561 = vmatmul.mubr.bf16.gmra.mrb[0].mxu0 %v517
        %v562 = vpop.f32.mrb[0].mxu0
        %v563 = vadd.f32 0.0, %v562
        %v564 = vpop.f32.mrb[0].mxu0
        %v565 = vadd.f32 0.0, %v564
        %v566 = vpop.f32.mrb[0].mxu0
        %v567 = vpop.f32.mrb[0].mxu0
        %568 = vdwg.mxu0
        %569 = vmatprep.subr.bf16.mxu0 0
        %570 = vmatpush1.bf16.msra.mxu0 %v526
        %571 = vmatprep.subr.bf16.mxu0 0
        %572 = vmatpush1.bf16.msra.mxu0 0
        %573 = vmatprep.subr.bf16.mxu0 0
        %574 = vmatpush1.bf16.msra.mxu0 0
        %575 = vmatprep.subr.bf16.mxu0 0
        %576 = vmatpush1.bf16.msra.mxu0 0
        %577 = vmatprep.subr.bf16.mxu0 0
        %578 = vmatpush1.bf16.msra.mxu0 0
        %579 = vmatprep.subr.bf16.mxu0 0
        %580 = vmatpush1.bf16.msra.mxu0 0
        %581 = vmatprep.subr.bf16.mxu0 0
        %582 = vmatpush1.bf16.msra.mxu0 0
        %583 = vmatprep.subr.bf16.mxu0 0
        %584 = vmatpush1.bf16.msra.mxu0 0
        %585 = vmatprep.subr.bf16.mxu0 0
        %586 = vmatpush1.bf16.msra.mxu0 0
        %587 = vmatprep.subr.bf16.mxu0 0
        %588 = vmatpush1.bf16.msra.mxu0 0
        %589 = vmatprep.subr.bf16.mxu0 0
        %590 = vmatpush1.bf16.msra.mxu0 0
        %591 = vmatprep.subr.bf16.mxu0 0
        %592 = vmatpush1.bf16.msra.mxu0 0
        %593 = vmatprep.subr.bf16.mxu0 0
        %594 = vmatpush1.bf16.msra.mxu0 0
        %595 = vmatprep.subr.bf16.mxu0 0
        %596 = vmatpush1.bf16.msra.mxu0 0
        %597 = vmatprep.subr.bf16.mxu0 0
        %598 = vmatpush1.bf16.msra.mxu0 0
        %599 = vmatprep.subr.bf16.mxu0 0
        %600 = vmatpush1.bf16.msra.mxu0 0
        %601 = vmatprep.mubr.bf16.mxu0 0
        %602 = vmatmul.mubr.bf16.gmra.mrb[0].mxu0 %v517
        %v603 = vpop.f32.mrb[0].mxu0
        %v604 = vadd.f32 0.0, %v603
        %v605 = vpop.f32.mrb[0].mxu0
        %v606 = vpop.f32.mrb[0].mxu0
        %v607 = vpop.f32.mrb[0].mxu0
        %608 = vdwg.mxu0
        %v609 = vadd.f32 %v499, %v563
        %v610 = vadd.f32 %v500, %v565
        %v611 = vadd.f32 %v501, %v604
        %s612 = scalar_lea.vmem %s1, 16
        %v613 = vld [vmem:[%s612] sm:$0xf]
        %614 = vrot.lane.b32.xlu0 %v182, 109
        %v615 = vpop.permute.xlu0 %614
        %616 = vrot.lane.b32.xlu0 %v190, 109
        %v617 = vpop.permute.xlu0 %616
        %618 = vrot.lane.b32.xlu0 %v189, 109
        %v619 = vpop.permute.xlu0 %618
        %620 = vrot.lane.b32.xlu0 %v191, 109
        %v621 = vpop.permute.xlu0 %620
        %vm622 = vcmask 891904
        %v623 = vsel %vm622, %v615, %v617
        %v624 = vsel %vm622, %v617, %v619
        %v625 = vsel %vm622, %v619, %v621
        %v627 = vsel %vm204, %v613, 0
        %v630 = vsel %vm208, %v623, 0
        %v633 = vsel %vm208, %v624, 0
        %v636 = vsel %vm208, %v625, 0
        %638 = vmatprep.subr.bf16.mxu0 %v633
        %639 = vmatpush1.bf16.msra.mxu0 %v630
        %640 = vmatprep.subr.bf16.mxu0 0
        %641 = vmatpush1.bf16.msra.mxu0 0
        %642 = vmatprep.subr.bf16.mxu0 0
        %643 = vmatpush1.bf16.msra.mxu0 0
        %644 = vmatprep.subr.bf16.mxu0 0
        %645 = vmatpush1.bf16.msra.mxu0 0
        %646 = vmatprep.subr.bf16.mxu0 0
        %647 = vmatpush1.bf16.msra.mxu0 0
        %648 = vmatprep.subr.bf16.mxu0 0
        %649 = vmatpush1.bf16.msra.mxu0 0
        %650 = vmatprep.subr.bf16.mxu0 0
        %651 = vmatpush1.bf16.msra.mxu0 0
        %652 = vmatprep.subr.bf16.mxu0 0
        %653 = vmatpush1.bf16.msra.mxu0 0
        %654 = vmatprep.subr.bf16.mxu0 0
        %655 = vmatpush1.bf16.msra.mxu0 0
        %656 = vmatprep.subr.bf16.mxu0 0
        %657 = vmatpush1.bf16.msra.mxu0 0
        %658 = vmatprep.subr.bf16.mxu0 0
        %659 = vmatpush1.bf16.msra.mxu0 0
        %660 = vmatprep.subr.bf16.mxu0 0
        %661 = vmatpush1.bf16.msra.mxu0 0
        %662 = vmatprep.subr.bf16.mxu0 0
        %663 = vmatpush1.bf16.msra.mxu0 0
        %664 = vmatprep.subr.bf16.mxu0 0
        %665 = vmatpush1.bf16.msra.mxu0 0
        %666 = vmatprep.subr.bf16.mxu0 0
        %667 = vmatpush1.bf16.msra.mxu0 0
        %668 = vmatprep.subr.bf16.mxu0 0
        %669 = vmatpush1.bf16.msra.mxu0 0
        %670 = vmatprep.mubr.bf16.mxu0 0
        %671 = vmatmul.mubr.bf16.gmra.mrb[0].mxu0 %v627
        %v672 = vpop.f32.mrb[0].mxu0
        %v673 = vadd.f32 0.0, %v672
        %v674 = vpop.f32.mrb[0].mxu0
        %v675 = vadd.f32 0.0, %v674
        %v676 = vpop.f32.mrb[0].mxu0
        %v677 = vpop.f32.mrb[0].mxu0
        %678 = vdwg.mxu0
        %679 = vmatprep.subr.bf16.mxu0 0
        %680 = vmatpush1.bf16.msra.mxu0 %v636
        %681 = vmatprep.subr.bf16.mxu0 0
        %682 = vmatpush1.bf16.msra.mxu0 0
        %683 = vmatprep.subr.bf16.mxu0 0
        %684 = vmatpush1.bf16.msra.mxu0 0
        %685 = vmatprep.subr.bf16.mxu0 0
        %686 = vmatpush1.bf16.msra.mxu0 0
        %687 = vmatprep.subr.bf16.mxu0 0
        %688 = vmatpush1.bf16.msra.mxu0 0
        %689 = vmatprep.subr.bf16.mxu0 0
        %690 = vmatpush1.bf16.msra.mxu0 0
        %691 = vmatprep.subr.bf16.mxu0 0
        %692 = vmatpush1.bf16.msra.mxu0 0
        %693 = vmatprep.subr.bf16.mxu0 0
        %694 = vmatpush1.bf16.msra.mxu0 0
        %695 = vmatprep.subr.bf16.mxu0 0
        %696 = vmatpush1.bf16.msra.mxu0 0
        %697 = vmatprep.subr.bf16.mxu0 0
        %698 = vmatpush1.bf16.msra.mxu0 0
        %699 = vmatprep.subr.bf16.mxu0 0
        %700 = vmatpush1.bf16.msra.mxu0 0
        %701 = vmatprep.subr.bf16.mxu0 0
        %702 = vmatpush1.bf16.msra.mxu0 0
        %703 = vmatprep.subr.bf16.mxu0 0
        %704 = vmatpush1.bf16.msra.mxu0 0
        %705 = vmatprep.subr.bf16.mxu0 0
        %706 = vmatpush1.bf16.msra.mxu0 0
        %707 = vmatprep.subr.bf16.mxu0 0
        %708 = vmatpush1.bf16.msra.mxu0 0
        %709 = vmatprep.subr.bf16.mxu0 0
        %710 = vmatpush1.bf16.msra.mxu0 0
        %711 = vmatprep.mubr.bf16.mxu0 0
        %712 = vmatmul.mubr.bf16.gmra.mrb[0].mxu0 %v627
        %v713 = vpop.f32.mrb[0].mxu0
        %v714 = vadd.f32 0.0, %v713
        %v715 = vpop.f32.mrb[0].mxu0
        %v716 = vpop.f32.mrb[0].mxu0
        %v717 = vpop.f32.mrb[0].mxu0
        %718 = vdwg.mxu0
        %v719 = vadd.f32 %v609, %v673
        %v720 = vadd.f32 %v610, %v675
        %v721 = vadd.f32 %v611, %v714
        %s722 = scalar_lea.vmem %s1, 20
        %v723 = vld [vmem:[%s722] sm:$0xf]
        %724 = vrot.lane.b32.xlu0 %v182, 108
        %v725 = vpop.permute.xlu0 %724
        %726 = vrot.lane.b32.xlu0 %v190, 108
        %v727 = vpop.permute.xlu0 %726
        %728 = vrot.lane.b32.xlu0 %v189, 108
        %v729 = vpop.permute.xlu0 %728
        %730 = vrot.lane.b32.xlu0 %v191, 108
        %v731 = vpop.permute.xlu0 %730
        %vm732 = vcmask 883712
        %v733 = vsel %vm732, %v725, %v727
        %v734 = vsel %vm732, %v727, %v729
        %v735 = vsel %vm732, %v729, %v731
        %v737 = vsel %vm204, %v723, 0
        %v740 = vsel %vm208, %v733, 0
        %v743 = vsel %vm208, %v734, 0
        %v746 = vsel %vm208, %v735, 0
        %748 = vmatprep.subr.bf16.mxu0 %v743
        %749 = vmatpush1.bf16.msra.mxu0 %v740
        %750 = vmatprep.subr.bf16.mxu0 0
        %751 = vmatpush1.bf16.msra.mxu0 0
        %752 = vmatprep.subr.bf16.mxu0 0
        %753 = vmatpush1.bf16.msra.mxu0 0
        %754 = vmatprep.subr.bf16.mxu0 0
        %755 = vmatpush1.bf16.msra.mxu0 0
        %756 = vmatprep.subr.bf16.mxu0 0
        %757 = vmatpush1.bf16.msra.mxu0 0
        %758 = vmatprep.subr.bf16.mxu0 0
        %759 = vmatpush1.bf16.msra.mxu0 0
        %760 = vmatprep.subr.bf16.mxu0 0
        %761 = vmatpush1.bf16.msra.mxu0 0
        %762 = vmatprep.subr.bf16.mxu0 0
        %763 = vmatpush1.bf16.msra.mxu0 0
        %764 = vmatprep.subr.bf16.mxu0 0
        %765 = vmatpush1.bf16.msra.mxu0 0
        %766 = vmatprep.subr.bf16.mxu0 0
        %767 = vmatpush1.bf16.msra.mxu0 0
        %768 = vmatprep.subr.bf16.mxu0 0
        %769 = vmatpush1.bf16.msra.mxu0 0
        %770 = vmatprep.subr.bf16.mxu0 0
        %771 = vmatpush1.bf16.msra.mxu0 0
        %772 = vmatprep.subr.bf16.mxu0 0
        %773 = vmatpush1.bf16.msra.mxu0 0
        %774 = vmatprep.subr.bf16.mxu0 0
        %775 = vmatpush1.bf16.msra.mxu0 0
        %776 = vmatprep.subr.bf16.mxu0 0
        %777 = vmatpush1.bf16.msra.mxu0 0
        %778 = vmatprep.subr.bf16.mxu0 0
        %779 = vmatpush1.bf16.msra.mxu0 0
        %780 = vmatprep.mubr.bf16.mxu0 0
        %781 = vmatmul.mubr.bf16.gmra.mrb[0].mxu0 %v737
        %v782 = vpop.f32.mrb[0].mxu0
        %v783 = vadd.f32 0.0, %v782
        %v784 = vpop.f32.mrb[0].mxu0
        %v785 = vadd.f32 0.0, %v784
        %v786 = vpop.f32.mrb[0].mxu0
        %v787 = vpop.f32.mrb[0].mxu0
        %788 = vdwg.mxu0
        %789 = vmatprep.subr.bf16.mxu0 0
        %790 = vmatpush1.bf16.msra.mxu0 %v746
        %791 = vmatprep.subr.bf16.mxu0 0
        %792 = vmatpush1.bf16.msra.mxu0 0
        %793 = vmatprep.subr.bf16.mxu0 0
        %794 = vmatpush1.bf16.msra.mxu0 0
        %795 = vmatprep.subr.bf16.mxu0 0
        %796 = vmatpush1.bf16.msra.mxu0 0
        %797 = vmatprep.subr.bf16.mxu0 0
        %798 = vmatpush1.bf16.msra.mxu0 0
        %799 = vmatprep.subr.bf16.mxu0 0
        %800 = vmatpush1.bf16.msra.mxu0 0
        %801 = vmatprep.subr.bf16.mxu0 0
        %802 = vmatpush1.bf16.msra.mxu0 0
        %803 = vmatprep.subr.bf16.mxu0 0
        %804 = vmatpush1.bf16.msra.mxu0 0
        %805 = vmatprep.subr.bf16.mxu0 0
        %806 = vmatpush1.bf16.msra.mxu0 0
        %807 = vmatprep.subr.bf16.mxu0 0
        %808 = vmatpush1.bf16.msra.mxu0 0
        %809 = vmatprep.subr.bf16.mxu0 0
        %810 = vmatpush1.bf16.msra.mxu0 0
        %811 = vmatprep.subr.bf16.mxu0 0
        %812 = vmatpush1.bf16.msra.mxu0 0
        %813 = vmatprep.subr.bf16.mxu0 0
        %814 = vmatpush1.bf16.msra.mxu0 0
        %815 = vmatprep.subr.bf16.mxu0 0
        %816 = vmatpush1.bf16.msra.mxu0 0
        %817 = vmatprep.subr.bf16.mxu0 0
        %818 = vmatpush1.bf16.msra.mxu0 0
        %819 = vmatprep.subr.bf16.mxu0 0
        %820 = vmatpush1.bf16.msra.mxu0 0
        %821 = vmatprep.mubr.bf16.mxu0 0
        %822 = vmatmul.mubr.bf16.gmra.mrb[0].mxu0 %v737
        %v823 = vpop.f32.mrb[0].mxu0
        %v824 = vadd.f32 0.0, %v823
        %v825 = vpop.f32.mrb[0].mxu0
        %v826 = vpop.f32.mrb[0].mxu0
        %v827 = vpop.f32.mrb[0].mxu0
        %828 = vdwg.mxu0
        %v829 = vadd.f32 %v719, %v783
        %v830 = vadd.f32 %v720, %v785
        %v831 = vadd.f32 %v721, %v824
        %s832 = scalar_lea.vmem %s1, 24
        %v833 = vld [vmem:[%s832] sm:$0xf]
        %834 = vrot.lane.b32.xlu0 %v182, 92
        %v835 = vpop.permute.xlu0 %834
        %836 = vrot.lane.b32.xlu0 %v190, 92
        %v837 = vpop.permute.xlu0 %836
        %838 = vrot.lane.b32.xlu0 %v189, 92
        %v839 = vpop.permute.xlu0 %838
        %840 = vrot.lane.b32.xlu0 %v191, 92
        %v841 = vpop.permute.xlu0 %840
        %vm842 = vcmask 752640
        %v843 = vsel %vm842, %v835, %v837
        %v844 = vsel %vm842, %v837, %v839
        %v845 = vsel %vm842, %v839, %v841
        %v847 = vsel %vm204, %v833, 0
        %v850 = vsel %vm208, %v843, 0
        %v853 = vsel %vm208, %v844, 0
        %v856 = vsel %vm208, %v845, 0
        %858 = vmatprep.subr.bf16.mxu0 %v853
        %859 = vmatpush1.bf16.msra.mxu0 %v850
        %860 = vmatprep.subr.bf16.mxu0 0
        %861 = vmatpush1.bf16.msra.mxu0 0
        %862 = vmatprep.subr.bf16.mxu0 0
        %863 = vmatpush1.bf16.msra.mxu0 0
        %864 = vmatprep.subr.bf16.mxu0 0
        %865 = vmatpush1.bf16.msra.mxu0 0
        %866 = vmatprep.subr.bf16.mxu0 0
        %867 = vmatpush1.bf16.msra.mxu0 0
        %868 = vmatprep.subr.bf16.mxu0 0
        %869 = vmatpush1.bf16.msra.mxu0 0
        %870 = vmatprep.subr.bf16.mxu0 0
        %871 = vmatpush1.bf16.msra.mxu0 0
        %872 = vmatprep.subr.bf16.mxu0 0
        %873 = vmatpush1.bf16.msra.mxu0 0
        %874 = vmatprep.subr.bf16.mxu0 0
        %875 = vmatpush1.bf16.msra.mxu0 0
        %876 = vmatprep.subr.bf16.mxu0 0
        %877 = vmatpush1.bf16.msra.mxu0 0
        %878 = vmatprep.subr.bf16.mxu0 0
        %879 = vmatpush1.bf16.msra.mxu0 0
        %880 = vmatprep.subr.bf16.mxu0 0
        %881 = vmatpush1.bf16.msra.mxu0 0
        %882 = vmatprep.subr.bf16.mxu0 0
        %883 = vmatpush1.bf16.msra.mxu0 0
        %884 = vmatprep.subr.bf16.mxu0 0
        %885 = vmatpush1.bf16.msra.mxu0 0
        %886 = vmatprep.subr.bf16.mxu0 0
        %887 = vmatpush1.bf16.msra.mxu0 0
        %888 = vmatprep.subr.bf16.mxu0 0
        %889 = vmatpush1.bf16.msra.mxu0 0
        %890 = vmatprep.mubr.bf16.mxu0 0
        %891 = vmatmul.mubr.bf16.gmra.mrb[0].mxu0 %v847
        %v892 = vpop.f32.mrb[0].mxu0
        %v893 = vadd.f32 0.0, %v892
        %v894 = vpop.f32.mrb[0].mxu0
        %v895 = vadd.f32 0.0, %v894
        %v896 = vpop.f32.mrb[0].mxu0
        %v897 = vpop.f32.mrb[0].mxu0
        %898 = vdwg.mxu0
        %899 = vmatprep.subr.bf16.mxu0 0
        %900 = vmatpush1.bf16.msra.mxu0 %v856
        %901 = vmatprep.subr.bf16.mxu0 0
        %902 = vmatpush1.bf16.msra.mxu0 0
        %903 = vmatprep.subr.bf16.mxu0 0
        %904 = vmatpush1.bf16.msra.mxu0 0
        %905 = vmatprep.subr.bf16.mxu0 0
        %906 = vmatpush1.bf16.msra.mxu0 0
        %907 = vmatprep.subr.bf16.mxu0 0
        %908 = vmatpush1.bf16.msra.mxu0 0
        %909 = vmatprep.subr.bf16.mxu0 0
        %910 = vmatpush1.bf16.msra.mxu0 0
        %911 = vmatprep.subr.bf16.mxu0 0
        %912 = vmatpush1.bf16.msra.mxu0 0
        %913 = vmatprep.subr.bf16.mxu0 0
        %914 = vmatpush1.bf16.msra.mxu0 0
        %915 = vmatprep.subr.bf16.mxu0 0
        %916 = vmatpush1.bf16.msra.mxu0 0
        %917 = vmatprep.subr.bf16.mxu0 0
        %918 = vmatpush1.bf16.msra.mxu0 0
        %919 = vmatprep.subr.bf16.mxu0 0
        %920 = vmatpush1.bf16.msra.mxu0 0
        %921 = vmatprep.subr.bf16.mxu0 0
        %922 = vmatpush1.bf16.msra.mxu0 0
        %923 = vmatprep.subr.bf16.mxu0 0
        %924 = vmatpush1.bf16.msra.mxu0 0
        %925 = vmatprep.subr.bf16.mxu0 0
        %926 = vmatpush1.bf16.msra.mxu0 0
        %927 = vmatprep.subr.bf16.mxu0 0
        %928 = vmatpush1.bf16.msra.mxu0 0
        %929 = vmatprep.subr.bf16.mxu0 0
        %930 = vmatpush1.bf16.msra.mxu0 0
        %931 = vmatprep.mubr.bf16.mxu0 0
        %932 = vmatmul.mubr.bf16.gmra.mrb[0].mxu0 %v847
        %v933 = vpop.f32.mrb[0].mxu0
        %v934 = vadd.f32 0.0, %v933
        %v935 = vpop.f32.mrb[0].mxu0
        %v936 = vpop.f32.mrb[0].mxu0
        %v937 = vpop.f32.mrb[0].mxu0
        %938 = vdwg.mxu0
        %v939 = vadd.f32 %v829, %v893
        %v940 = vadd.f32 %v830, %v895
        %v941 = vadd.f32 %v831, %v934
        %s942 = scalar_lea.vmem %s1, 28
        %v943 = vld [vmem:[%s942] sm:$0xf]
        %944 = vrot.lane.b32.xlu0 %v182, 91
        %v945 = vpop.permute.xlu0 %944
        %946 = vrot.lane.b32.xlu0 %v190, 91
        %v947 = vpop.permute.xlu0 %946
        %948 = vrot.lane.b32.xlu0 %v189, 91
        %v949 = vpop.permute.xlu0 %948
        %950 = vrot.lane.b32.xlu0 %v191, 91
        %v951 = vpop.permute.xlu0 %950
        %vm952 = vcmask 744448
        %v953 = vsel %vm952, %v945, %v947
        %v954 = vsel %vm952, %v947, %v949
        %v955 = vsel %vm952, %v949, %v951
        %v957 = vsel %vm204, %v943, 0
        %v960 = vsel %vm208, %v953, 0
        %v963 = vsel %vm208, %v954, 0
        %v966 = vsel %vm208, %v955, 0
        %968 = vmatprep.subr.bf16.mxu0 %v963
        %969 = vmatpush1.bf16.msra.mxu0 %v960
        %970 = vmatprep.subr.bf16.mxu0 0
        %971 = vmatpush1.bf16.msra.mxu0 0
        %972 = vmatprep.subr.bf16.mxu0 0
        %973 = vmatpush1.bf16.msra.mxu0 0
        %974 = vmatprep.subr.bf16.mxu0 0
        %975 = vmatpush1.bf16.msra.mxu0 0
        %976 = vmatprep.subr.bf16.mxu0 0
        %977 = vmatpush1.bf16.msra.mxu0 0
        %978 = vmatprep.subr.bf16.mxu0 0
        %979 = vmatpush1.bf16.msra.mxu0 0
        %980 = vmatprep.subr.bf16.mxu0 0
        %981 = vmatpush1.bf16.msra.mxu0 0
        %982 = vmatprep.subr.bf16.mxu0 0
        %983 = vmatpush1.bf16.msra.mxu0 0
        %984 = vmatprep.subr.bf16.mxu0 0
        %985 = vmatpush1.bf16.msra.mxu0 0
        %986 = vmatprep.subr.bf16.mxu0 0
        %987 = vmatpush1.bf16.msra.mxu0 0
        %988 = vmatprep.subr.bf16.mxu0 0
        %989 = vmatpush1.bf16.msra.mxu0 0
        %990 = vmatprep.subr.bf16.mxu0 0
        %991 = vmatpush1.bf16.msra.mxu0 0
        %992 = vmatprep.subr.bf16.mxu0 0
        %993 = vmatpush1.bf16.msra.mxu0 0
        %994 = vmatprep.subr.bf16.mxu0 0
        %995 = vmatpush1.bf16.msra.mxu0 0
        %996 = vmatprep.subr.bf16.mxu0 0
        %997 = vmatpush1.bf16.msra.mxu0 0
        %998 = vmatprep.subr.bf16.mxu0 0
        %999 = vmatpush1.bf16.msra.mxu0 0
        %1000 = vmatprep.mubr.bf16.mxu0 0
        %1001 = vmatmul.mubr.bf16.gmra.mrb[0].mxu0 %v957
        %v1002 = vpop.f32.mrb[0].mxu0
        %v1003 = vadd.f32 0.0, %v1002
        %v1004 = vpop.f32.mrb[0].mxu0
        %v1005 = vadd.f32 0.0, %v1004
        %v1006 = vpop.f32.mrb[0].mxu0
        %v1007 = vpop.f32.mrb[0].mxu0
        %1008 = vdwg.mxu0
        %1009 = vmatprep.subr.bf16.mxu0 0
        %1010 = vmatpush1.bf16.msra.mxu0 %v966
        %1011 = vmatprep.subr.bf16.mxu0 0
        %1012 = vmatpush1.bf16.msra.mxu0 0
        %1013 = vmatprep.subr.bf16.mxu0 0
        %1014 = vmatpush1.bf16.msra.mxu0 0
        %1015 = vmatprep.subr.bf16.mxu0 0
        %1016 = vmatpush1.bf16.msra.mxu0 0
        %1017 = vmatprep.subr.bf16.mxu0 0
        %1018 = vmatpush1.bf16.msra.mxu0 0
        %1019 = vmatprep.subr.bf16.mxu0 0
        %1020 = vmatpush1.bf16.msra.mxu0 0
        %1021 = vmatprep.subr.bf16.mxu0 0
        %1022 = vmatpush1.bf16.msra.mxu0 0
        %1023 = vmatprep.subr.bf16.mxu0 0
        %1024 = vmatpush1.bf16.msra.mxu0 0
        %1025 = vmatprep.subr.bf16.mxu0 0
        %1026 = vmatpush1.bf16.msra.mxu0 0
        %1027 = vmatprep.subr.bf16.mxu0 0
        %1028 = vmatpush1.bf16.msra.mxu0 0
        %1029 = vmatprep.subr.bf16.mxu0 0
        %1030 = vmatpush1.bf16.msra.mxu0 0
        %1031 = vmatprep.subr.bf16.mxu0 0
        %1032 = vmatpush1.bf16.msra.mxu0 0
        %1033 = vmatprep.subr.bf16.mxu0 0
        %1034 = vmatpush1.bf16.msra.mxu0 0
        %1035 = vmatprep.subr.bf16.mxu0 0
        %1036 = vmatpush1.bf16.msra.mxu0 0
        %1037 = vmatprep.subr.bf16.mxu0 0
        %1038 = vmatpush1.bf16.msra.mxu0 0
        %1039 = vmatprep.subr.bf16.mxu0 0
        %1040 = vmatpush1.bf16.msra.mxu0 0
        %1041 = vmatprep.mubr.bf16.mxu0 0
        %1042 = vmatmul.mubr.bf16.gmra.mrb[0].mxu0 %v957
        %v1043 = vpop.f32.mrb[0].mxu0
        %v1044 = vadd.f32 0.0, %v1043
        %v1045 = vpop.f32.mrb[0].mxu0
        %v1046 = vpop.f32.mrb[0].mxu0
        %v1047 = vpop.f32.mrb[0].mxu0
        %1048 = vdwg.mxu0
        %v1049 = vadd.f32 %v939, %v1003
        %v1050 = vadd.f32 %v940, %v1005
        %v1051 = vadd.f32 %v941, %v1044
        %s1052 = scalar_lea.vmem %s1, 32
        %v1053 = vld [vmem:[%s1052] sm:$0xf]
        %1054 = vrot.lane.b32.xlu0 %v182, 90
        %v1055 = vpop.permute.xlu0 %1054
        %1056 = vrot.lane.b32.xlu0 %v190, 90
        %v1057 = vpop.permute.xlu0 %1056
        %1058 = vrot.lane.b32.xlu0 %v189, 90
        %v1059 = vpop.permute.xlu0 %1058
        %1060 = vrot.lane.b32.xlu0 %v191, 90
        %v1061 = vpop.permute.xlu0 %1060
        %vm1062 = vcmask 736256
        %v1063 = vsel %vm1062, %v1055, %v1057
        %v1064 = vsel %vm1062, %v1057, %v1059
        %v1065 = vsel %vm1062, %v1059, %v1061
        %v1067 = vsel %vm204, %v1053, 0
        %v1070 = vsel %vm208, %v1063, 0
        %v1073 = vsel %vm208, %v1064, 0
        %v1076 = vsel %vm208, %v1065, 0
        %1078 = vmatprep.subr.bf16.mxu0 %v1073
        %1079 = vmatpush1.bf16.msra.mxu0 %v1070
        %1080 = vmatprep.subr.bf16.mxu0 0
        %1081 = vmatpush1.bf16.msra.mxu0 0
        %1082 = vmatprep.subr.bf16.mxu0 0
        %1083 = vmatpush1.bf16.msra.mxu0 0
        %1084 = vmatprep.subr.bf16.mxu0 0
        %1085 = vmatpush1.bf16.msra.mxu0 0
        %1086 = vmatprep.subr.bf16.mxu0 0
        %1087 = vmatpush1.bf16.msra.mxu0 0
        %1088 = vmatprep.subr.bf16.mxu0 0
        %1089 = vmatpush1.bf16.msra.mxu0 0
        %1090 = vmatprep.subr.bf16.mxu0 0
        %1091 = vmatpush1.bf16.msra.mxu0 0
        %1092 = vmatprep.subr.bf16.mxu0 0
        %1093 = vmatpush1.bf16.msra.mxu0 0
        %1094 = vmatprep.subr.bf16.mxu0 0
        %1095 = vmatpush1.bf16.msra.mxu0 0
        %1096 = vmatprep.subr.bf16.mxu0 0
        %1097 = vmatpush1.bf16.msra.mxu0 0
        %1098 = vmatprep.subr.bf16.mxu0 0
        %1099 = vmatpush1.bf16.msra.mxu0 0
        %1100 = vmatprep.subr.bf16.mxu0 0
        %1101 = vmatpush1.bf16.msra.mxu0 0
        %1102 = vmatprep.subr.bf16.mxu0 0
        %1103 = vmatpush1.bf16.msra.mxu0 0
        %1104 = vmatprep.subr.bf16.mxu0 0
        %1105 = vmatpush1.bf16.msra.mxu0 0
        %1106 = vmatprep.subr.bf16.mxu0 0
        %1107 = vmatpush1.bf16.msra.mxu0 0
        %1108 = vmatprep.subr.bf16.mxu0 0
        %1109 = vmatpush1.bf16.msra.mxu0 0
        %1110 = vmatprep.mubr.bf16.mxu0 0
        %1111 = vmatmul.mubr.bf16.gmra.mrb[0].mxu0 %v1067
        %v1112 = vpop.f32.mrb[0].mxu0
        %v1113 = vadd.f32 0.0, %v1112
        %v1114 = vpop.f32.mrb[0].mxu0
        %v1115 = vadd.f32 0.0, %v1114
        %v1116 = vpop.f32.mrb[0].mxu0
        %v1117 = vpop.f32.mrb[0].mxu0
        %1118 = vdwg.mxu0
        %1119 = vmatprep.subr.bf16.mxu0 0
        %1120 = vmatpush1.bf16.msra.mxu0 %v1076
        %1121 = vmatprep.subr.bf16.mxu0 0
        %1122 = vmatpush1.bf16.msra.mxu0 0
        %1123 = vmatprep.subr.bf16.mxu0 0
        %1124 = vmatpush1.bf16.msra.mxu0 0
        %1125 = vmatprep.subr.bf16.mxu0 0
        %1126 = vmatpush1.bf16.msra.mxu0 0
        %1127 = vmatprep.subr.bf16.mxu0 0
        %1128 = vmatpush1.bf16.msra.mxu0 0
        %1129 = vmatprep.subr.bf16.mxu0 0
        %1130 = vmatpush1.bf16.msra.mxu0 0
        %1131 = vmatprep.subr.bf16.mxu0 0
        %1132 = vmatpush1.bf16.msra.mxu0 0
        %1133 = vmatprep.subr.bf16.mxu0 0
        %1134 = vmatpush1.bf16.msra.mxu0 0
        %1135 = vmatprep.subr.bf16.mxu0 0
        %1136 = vmatpush1.bf16.msra.mxu0 0
        %1137 = vmatprep.subr.bf16.mxu0 0
        %1138 = vmatpush1.bf16.msra.mxu0 0
        %1139 = vmatprep.subr.bf16.mxu0 0
        %1140 = vmatpush1.bf16.msra.mxu0 0
        %1141 = vmatprep.subr.bf16.mxu0 0
        %1142 = vmatpush1.bf16.msra.mxu0 0
        %1143 = vmatprep.subr.bf16.mxu0 0
        %1144 = vmatpush1.bf16.msra.mxu0 0
        %1145 = vmatprep.subr.bf16.mxu0 0
        %1146 = vmatpush1.bf16.msra.mxu0 0
        %1147 = vmatprep.subr.bf16.mxu0 0
        %1148 = vmatpush1.bf16.msra.mxu0 0
        %1149 = vmatprep.subr.bf16.mxu0 0
        %1150 = vmatpush1.bf16.msra.mxu0 0
        %1151 = vmatprep.mubr.bf16.mxu0 0
        %1152 = vmatmul.mubr.bf16.gmra.mrb[0].mxu0 %v1067
        %v1153 = vpop.f32.mrb[0].mxu0
        %v1154 = vadd.f32 0.0, %v1153
        %v1155 = vpop.f32.mrb[0].mxu0
        %v1156 = vpop.f32.mrb[0].mxu0
        %v1157 = vpop.f32.mrb[0].mxu0
        %1158 = vdwg.mxu0
        %v1159 = vadd.f32 %v1049, %v1113
        %v1160 = vadd.f32 %v1050, %v1115
        %v1161 = vadd.f32 %v1051, %v1154
        %v1162 = vld [vmem:[%s2] sm:$0xff]
        %1164 = vset.pattern.permute.xlu0 0
        %1165 = vperm.xlu0 %1164, %v1162
        %v1166 = vpop.permute.xlu0 %1165
        %v1168 = vadd.f32 %v1159, %v1166
        %v1169 = vadd.f32 %v1160, %v1166
        %v1170 = vadd.f32 %v1161, %v1166
        %v1171 = vmax.f32 %v1168, 0.0
        %v1172 = vmax.f32 %v1169, 0.0
        %v1173 = vmax.f32 %v1170, 0.0
        %v1174 = vpack.c.bf16 %v1171, %v1171
        %v1175 = vpack.c.bf16 %v1172, %v1172
        %v1176 = vpack.c.bf16 %v1173, %v1173
        %v1180 = vunpack.c.l.b16 %v1174
        %v1181 = vunpack.c.l.b16 %v1175
        %v1182 = vunpack.c.l.b16 %v1176
        %v1183 = vpack.c.b16 %v1181, %v1180
        %v1184 = vpack.c.b16 %v1182, %v1182
        %1187 = vst [vmem:[%s163] sm:$0xff] %v1183
        %1188 = vst [vmem:[%s163 + $0x8] sm:$0xf] %v1184
        %s1189 = sand.u32 %s93, 1
        %s1190 = scalar_lea.sflag [#allocation3], %s1189
        %s1191 = sand.u32 %s93, 1
        %s1192 = smul.addr %s1191, 12
        %s1193 = scalar_lea.vmem [#allocation2], %s1192
        // Predicated region
        $region33: #{tpu_custom_call.1} parent=31 // pred_check
          %p1194 = pneg %p103
        $region34: #{tpu_custom_call.1} parent=31 // pred_check_branch
          %1196 = sbr.rel (%p1194) target = $region36
        $region35: #{tpu_custom_call.1} parent=31 // pred_region
          %s1198 = ssub.s32 192, 192
          %1199 = vsyncadd %s1190, %s1198
          %s1200 = smul.addr %s17, 3
          %s1201 = smul.addr %s1200, 64
          %s1202 = scalar_lea.hbm %s3, %s1201
          %s1204 = sshll.u32 %s1193, 4
          %s1205 = int_to_ptr.vmem [resolvable:$true] %s1204
          %1207 = dma.vmem_to_hbm [thread:$0]  %s1205, 192, %s1202, %s1190
        $region36: #{tpu_custom_call.1} parent=31 // pred_fallthru
          _
      $region32: #{tpu_custom_call.1} parent=5 // pred_fallthru
        _
      %p1208 = scmp.le.s32.totalorder 2, %s12
      // Predicated region
      $region37: #{tpu_custom_call.1} parent=5 // pred_check
        %p1209 = pneg %p1208
      $region38: #{tpu_custom_call.1} parent=5 // pred_check_branch
        %1211 = sbr.rel (%p1209) target = $region40
      $region39: #{tpu_custom_call.1} parent=5 // pred_region
        %s1212 = ssub.s32 %s12, 2
        // Predicated region
        $region41: #{tpu_custom_call.1} parent=39 // pred_check
          %p1213 = pneg %p109
        $region42: #{tpu_custom_call.1} parent=39 // pred_check_branch
          %1215 = sbr.rel (%p1213) target = $region44
        $region43: #{tpu_custom_call.1} parent=39 // pred_region
          %s1216 = sand.u32 %s94, 1
          %s1217 = scalar_lea.sflag [#allocation3], %s1216
          %s1218 = sand.u32 %s94, 1
          %s1219 = smul.addr %s1218, 12
          %s1220 = scalar_lea.vmem [#allocation2], %s1219
          %1221 = dma.done %s1217, 192
        $region44: #{tpu_custom_call.1} parent=39 // pred_fallthru
          _
      $region40: #{tpu_custom_call.1} parent=5 // pred_fallthru
        _
    $region6: #{tpu_custom_call.1} parent=1 // loop_footer
      %s16 = sadd.s32 1, %s12
    $region7: #{tpu_custom_call.1} parent=1 // loop_footer_branch
      %11 = sbr.rel target = $region3
    $region8: #{tpu_custom_call.1} parent=1 // loop_exit
      _
    %1222 = vsyncpa [#allocation3], 1
    %s1223 = scalar_lea.sflag [#allocation3], 1
    %1224 = vsyncpa %s1223, 1

</llo_original>
